<compile_context>
chip_gen: v5e
topology: v5e:2x2
jax: 0.10.0
libtpu: 0.0.40
codegen_flags: <defaults>
</compile_context>

<pallas_src>
import jax
import jax.numpy as jnp
from jax.experimental import pallas as pl
from jax.experimental.pallas import tpu as pltpu

IN_F, HID_F, OUT_F = 20, 10, 3


def _round_up(n, m):
    return ((n + m - 1) // m) * m


def tadpole_kernel(xT_ref, w1_ref, b1_ref, w2_ref, b2_ref, oT_ref):
    # xT: (IN_F, TB)   -- batch on the lane dimension (lane-dense)
    # w1: (HID_F, IN_F), b1: (HID_F, 1), w2: (OUT_F, HID_F), b2: (OUT_F, 1)
    xT = xT_ref[...]
    hT = jnp.dot(w1_ref[...], xT, preferred_element_type=jnp.float32) + b1_ref[...]
    hT = jnp.maximum(hT, 0.0)                                  # ReLU on the VPU
    oT = jnp.dot(w2_ref[...], hT, preferred_element_type=jnp.float32) + b2_ref[...]
    oT_ref[...] = oT.astype(oT_ref.dtype)


def tadpole_forward(x, w1, b1, w2, b2, *, tb=8192):
    """x: [B, 20] f32; weights in PyTorch layout (w: [out, in], b: [out])."""
    B = x.shape[0]
    # Lane tile: multiple of 128, capped at `tb`, no bigger than needed.
    TB = min(_round_up(tb, 128), _round_up(max(B, 1), 128))
    Bp = _round_up(B, TB)
    grid = (Bp // TB,)

    # Layout plumbing (cheap: x is the only large operand and is tiny per row):
    # pad batch to a tile multiple, transpose so batch lands on lanes.
    xT = jnp.pad(x, ((0, Bp - B), (0, 0))).T          # (IN_F, Bp)
    b1c = b1.reshape(HID_F, 1).astype(jnp.float32)
    b2c = b2.reshape(OUT_F, 1).astype(jnp.float32)

    cost = pl.CostEstimate(
        flops=2 * Bp * (IN_F * HID_F + HID_F * OUT_F),
        transcendentals=0,
        bytes_accessed=4 * (Bp * (IN_F + OUT_F)
                            + HID_F * (IN_F + 1) + OUT_F * (HID_F + 1)),
    )

    outT = pl.pallas_call(
        tadpole_kernel,
        out_shape=jax.ShapeDtypeStruct((OUT_F, Bp), jnp.float32),
        grid_spec=pltpu.PrefetchScalarGridSpec(
            num_scalar_prefetch=0,
            grid=grid,
            in_specs=[
                pl.BlockSpec((IN_F, TB), lambda i: (0, i)),     # x tile (pipelined)
                pl.BlockSpec((HID_F, IN_F), lambda i: (0, 0)),  # weights: VMEM-resident
                pl.BlockSpec((HID_F, 1), lambda i: (0, 0)),
                pl.BlockSpec((OUT_F, HID_F), lambda i: (0, 0)),
                pl.BlockSpec((OUT_F, 1), lambda i: (0, 0)),
            ],
            out_specs=pl.BlockSpec((OUT_F, TB), lambda i: (0, i)),
        ),
        compiler_params=pltpu.CompilerParams(
            dimension_semantics=("parallel",)),   # megacore-shard batch on v7x
        cost_estimate=cost,
    )(xT, w1, b1c, w2, b2c)

    return outT[:, :B].T                                        # back to (B, OUT_F)


def init_params(key):
    """Deterministic init mimicking nn.Linear's default U(-1/sqrt(fan_in), +),
    stored in PyTorch layout: W [out, in], b [out]."""
    k1, k2, k3, k4 = jax.random.split(key, 4)
    bound1 = 1.0 / jnp.sqrt(jnp.float32(IN_F))
    bound2 = 1.0 / jnp.sqrt(jnp.float32(HID_F))
    w1 = jax.random.uniform(k1, (HID_F, IN_F), jnp.float32, -bound1, bound1)
    b1 = jax.random.uniform(k2, (HID_F,), jnp.float32, -bound1, bound1)
    w2 = jax.random.uniform(k3, (OUT_F, HID_F), jnp.float32, -bound2, bound2)
    b2 = jax.random.uniform(k4, (OUT_F,), jnp.float32, -bound2, bound2)
    return w1, b1, w2, b2


if __name__ == "__main__":
    key = jax.random.PRNGKey(0)
    kx, kx2, kp = jax.random.split(key, 3)
    w1, b1, w2, b2 = init_params(kp)

    def ref_fwd(xx):
        return jnp.maximum(xx @ w1.T + b1[None, :], 0.0) @ w2.T + b2[None, :]

    # Small batch (B=8): single padded 128-lane tile, one grid step.
    x = jax.random.normal(kx, (8, IN_F), jnp.float32)
    out = jax.block_until_ready(tadpole_forward(x, w1, b1, w2, b2))
    assert out.shape == (8, OUT_F)
    assert jnp.allclose(out, ref_fwd(x), atol=1e-5, rtol=1e-5)

    # Non-tile-multiple batch with a forced-small tile to exercise the
    # multi-step pipelined grid and the padding/slice path.
    x2 = jax.random.normal(kx2, (300, IN_F), jnp.float32)
    out2 = jax.block_until_ready(tadpole_forward(x2, w1, b1, w2, b2, tb=128))
    assert out2.shape == (300, OUT_F)
    assert jnp.allclose(out2, ref_fwd(x2), atol=1e-5, rtol=1e-5)

    print("KERNEL_OK")
</pallas_src>

<mosaic_0001>
module attributes {stable_mosaic.version = 11 : i64} {
  func.func @tadpole_kernel(%arg0: i32, %arg1: memref<20x128xf32, #tpu.memory_space<vmem>>, %arg2: memref<10x20xf32, #tpu.memory_space<vmem>>, %arg3: memref<10x1xf32, #tpu.memory_space<vmem>>, %arg4: memref<3x10xf32, #tpu.memory_space<vmem>>, %arg5: memref<3x1xf32, #tpu.memory_space<vmem>>, %arg6: memref<3x128xf32, #tpu.memory_space<vmem>>) attributes {dimension_semantics = [#tpu.dimension_semantics<parallel>], iteration_bounds = array<i64: 1>, scalar_prefetch = 0 : i64, scratch_operands = 0 : i64, tpu.core_type = #tpu.core_type<tc>, window_params = [{transform_indices = @transform_0, window_bounds = array<i64: 20, 128>}, {pipeline_mode = #tpu.pipeline_mode<synchronous>, transform_indices = @transform_1, window_bounds = array<i64: 10, 20>}, {pipeline_mode = #tpu.pipeline_mode<synchronous>, transform_indices = @transform_2, window_bounds = array<i64: 10, 1>}, {pipeline_mode = #tpu.pipeline_mode<synchronous>, transform_indices = @transform_3, window_bounds = array<i64: 3, 10>}, {pipeline_mode = #tpu.pipeline_mode<synchronous>, transform_indices = @transform_4, window_bounds = array<i64: 3, 1>}, {transform_indices = @transform_5, window_bounds = array<i64: 3, 128>}]} {
    %c0 = arith.constant 0 : index
    %c0_0 = arith.constant 0 : index
    %0 = vector.load %arg1[%c0, %c0_0] : memref<20x128xf32, #tpu.memory_space<vmem>>, vector<20x128xf32>
    %c0_1 = arith.constant 0 : index
    %c0_2 = arith.constant 0 : index
    %1 = vector.load %arg2[%c0_1, %c0_2] : memref<10x20xf32, #tpu.memory_space<vmem>>, vector<10x20xf32>
    %cst = arith.constant dense<0.000000e+00> : vector<10x128xf32>
    %2 = tpu.matmul %1, %0, %cst {dimension_numbers = #tpu.dot_dimension_numbers<[1], [0], [0], [1], [0, 0, 1, 1], [], []>} : vector<10x20xf32>, vector<20x128xf32>, vector<10x128xf32> -> vector<10x128xf32>
    %c0_3 = arith.constant 0 : index
    %c0_4 = arith.constant 0 : index
    %3 = vector.load %arg3[%c0_3, %c0_4] : memref<10x1xf32, #tpu.memory_space<vmem>>, vector<10x1xf32>
    %4 = vector.broadcast %3 : vector<10x1xf32> to vector<10x128xf32>
    %5 = arith.addf %2, %4 : vector<10x128xf32>
    %cst_5 = arith.constant 0.000000e+00 : f32
    %6 = vector.broadcast %cst_5 : f32 to vector<10x128xf32>
    %7 = arith.maximumf %5, %6 : vector<10x128xf32>
    %c0_6 = arith.constant 0 : index
    %c0_7 = arith.constant 0 : index
    %8 = vector.load %arg4[%c0_6, %c0_7] : memref<3x10xf32, #tpu.memory_space<vmem>>, vector<3x10xf32>
    %cst_8 = arith.constant dense<0.000000e+00> : vector<3x128xf32>
    %9 = tpu.matmul %8, %7, %cst_8 {dimension_numbers = #tpu.dot_dimension_numbers<[1], [0], [0], [1], [0, 0, 1, 1], [], []>} : vector<3x10xf32>, vector<10x128xf32>, vector<3x128xf32> -> vector<3x128xf32>
    %c0_9 = arith.constant 0 : index
    %c0_10 = arith.constant 0 : index
    %10 = vector.load %arg5[%c0_9, %c0_10] : memref<3x1xf32, #tpu.memory_space<vmem>>, vector<3x1xf32>
    %11 = vector.broadcast %10 : vector<3x1xf32> to vector<3x128xf32>
    %12 = arith.addf %9, %11 : vector<3x128xf32>
    %c0_11 = arith.constant 0 : index
    %c0_12 = arith.constant 0 : index
    %13 = vector.load %arg6[%c0_11, %c0_12] : memref<3x128xf32, #tpu.memory_space<vmem>>, vector<3x128xf32>
    tpu.vector_store %arg6[%c0_11, %c0_12], %12 {strides = array<i32>} : memref<3x128xf32, #tpu.memory_space<vmem>>, vector<3x128xf32>,
    return
  }
  func.func @transform_0(%arg0: i32) -> (i32, i32) {
    %c0_i32 = arith.constant 0 : i32
    %c0_i32_0 = arith.constant 0 : i32
    return %c0_i32, %arg0 : i32, i32
  }
  func.func @transform_1(%arg0: i32) -> (i32, i32) {
    %c0_i32 = arith.constant 0 : i32
    %c0_i32_0 = arith.constant 0 : i32
    %c0_i32_1 = arith.constant 0 : i32
    return %c0_i32, %c0_i32_0 : i32, i32
  }
  func.func @transform_2(%arg0: i32) -> (i32, i32) {
    %c0_i32 = arith.constant 0 : i32
    %c0_i32_0 = arith.constant 0 : i32
    %c0_i32_1 = arith.constant 0 : i32
    return %c0_i32, %c0_i32_0 : i32, i32
  }
  func.func @transform_3(%arg0: i32) -> (i32, i32) {
    %c0_i32 = arith.constant 0 : i32
    %c0_i32_0 = arith.constant 0 : i32
    %c0_i32_1 = arith.constant 0 : i32
    return %c0_i32, %c0_i32_0 : i32, i32
  }
  func.func @transform_4(%arg0: i32) -> (i32, i32) {
    %c0_i32 = arith.constant 0 : i32
    %c0_i32_0 = arith.constant 0 : i32
    %c0_i32_1 = arith.constant 0 : i32
    return %c0_i32, %c0_i32_0 : i32, i32
  }
  func.func @transform_5(%arg0: i32) -> (i32, i32) {
    %c0_i32 = arith.constant 0 : i32
    %c0_i32_0 = arith.constant 0 : i32
    return %c0_i32, %arg0 : i32, i32
  }
}

</mosaic_0001>

<llo_original>
// kernel: tpu_custom_call.1
$region0: #{tpu_custom_call.1}
  #allocation0 [shape = 'u32[]', space=smem, size = 0x4, offset = 0x4, fixed_abs, tag = 'smem constant byte address 0x4 - core index']
  #allocation1 [shape = 'u32[72,128]{1,0:T(1,128)}', space=vmem, size = 0x9000, scoped, tag = 'internal scratch']
  %s0 = inlined_call_operand.hbm [shape: f32[20,128], index: 0, kind: input, shape index: {}]
  %s1 = inlined_call_operand.vmem [shape: f32[10,20], index: 1, kind: input, shape index: {}]
  %s2 = inlined_call_operand.vmem [shape: f32[10,1], index: 2, kind: input, shape index: {}]
  %s3 = inlined_call_operand.vmem [shape: f32[3,10], index: 3, kind: input, shape index: {}]
  %s4 = inlined_call_operand.vmem [shape: f32[3,1], index: 4, kind: input, shape index: {}]
  %s5 = inlined_call_operand.hbm [shape: f32[3,128], index: 5, kind: output, shape index: {}]
  %s6 = sld [smem:[#allocation0]]
  $region34: #{tpu_custom_call.1} parent=0
    _
  %s8 = ssub.s32 1, %s6
  %s9 = scalar_select 0, %s8, %s6
  $region1: #{tpu_custom_call.1} parent=0
    #allocation2 [shape = 'u8[12288]{0}', space=vmem, size = 0x3000, scoped, tag = 'input window, operand 0, single buffered']
    #allocation3 [shape = 's32[1]{0}', space=sflag, size = 0x4, scoped, tag = 'scoped memory for tpu_custom_call.1']
    #allocation4 [shape = 's32[1]{0}', space=sflag, size = 0x4, scoped, tag = 'scoped memory for tpu_custom_call.1']
    #allocation5 [shape = 'u8[2048]{0}', space=vmem, size = 0x800, scoped, tag = 'output window, operand 0, single buffered']
    %10 = vsyncpa [#allocation3], 0
    %11 = vsyncpa [#allocation4], 0
    // Predicated region
    $region2: #{tpu_custom_call.1} parent=1 // pred_check
      _
    $region3: #{tpu_custom_call.1} parent=1 // pred_check_branch
      %13 = sbr.rel (0) target = $region5
    $region4: #{tpu_custom_call.1} parent=1 // pred_region
      %15 = vsyncadd [#allocation3], 0
      %s16 = sshll.u32 %s0, 4
      %s17 = int_to_ptr.hbm [resolvable:$true] %s16
      %s18 = sshll.u32 [#allocation2], 4
      %s19 = int_to_ptr.vmem [resolvable:$true] %s18
      %24 = dma.hbm_to_vmem [thread:$0]  %s17, 384, %s19, [#allocation3], 128, 128, 8
    $region5: #{tpu_custom_call.1} parent=1 // pred_fallthru
      _
    // Predicated region
    $region6: #{tpu_custom_call.1} parent=1 // pred_check
      _
    $region7: #{tpu_custom_call.1} parent=1 // pred_check_branch
      %26 = sbr.rel (0) target = $region9
    $region8: #{tpu_custom_call.1} parent=1 // pred_region
      _
    $region9: #{tpu_custom_call.1} parent=1 // pred_fallthru
      _
    // Predicated region
    $region10: #{tpu_custom_call.1} parent=1 // pred_check
      _
    $region11: #{tpu_custom_call.1} parent=1 // pred_check_branch
      %28 = sbr.rel (0) target = $region13
    $region12: #{tpu_custom_call.1} parent=1 // pred_region
      _
    $region13: #{tpu_custom_call.1} parent=1 // pred_fallthru
      _
    // Predicated region
    $region14: #{tpu_custom_call.1} parent=1 // pred_check
      _
    $region15: #{tpu_custom_call.1} parent=1 // pred_check_branch
      %30 = sbr.rel (0) target = $region17
    $region16: #{tpu_custom_call.1} parent=1 // pred_region
      _
    $region17: #{tpu_custom_call.1} parent=1 // pred_fallthru
      _
    // Predicated region
    $region18: #{tpu_custom_call.1} parent=1 // pred_check
      _
    $region19: #{tpu_custom_call.1} parent=1 // pred_check_branch
      %32 = sbr.rel (0) target = $region21
    $region20: #{tpu_custom_call.1} parent=1 // pred_region
      _
    $region21: #{tpu_custom_call.1} parent=1 // pred_fallthru
      _
    // Predicated region
    $region22: #{tpu_custom_call.1} parent=1 // pred_check
      _
    $region23: #{tpu_custom_call.1} parent=1 // pred_check_branch
      %34 = sbr.rel (0) target = $region25
    $region24: #{tpu_custom_call.1} parent=1 // pred_region
      %36 = dma.done [#allocation3], 384
    $region25: #{tpu_custom_call.1} parent=1 // pred_fallthru
      _
    %v37 = vld [vmem:[#allocation2] sm:$0xff]
    %v38 = vld [vmem:[#allocation2 + $0x8] sm:$0xff]
    %v39 = vld [vmem:[#allocation2 + $0x10] sm:$0xf]
    %v40 = vld [vmem:[%s1] sm:$0xff]
    %v41 = vld [vmem:[%s1 + $0x8] sm:$0x3]
    %v42 = vld [vmem:[%s2] sm:$0xff]
    %v43 = vld [vmem:[%s2 + $0x8] sm:$0x3]
    %45 = vset.pattern.permute.xlu0 0
    %46 = vperm.xlu0 %45, %v42
    %v47 = vpop.permute.xlu0 %46
    %50 = vset.pattern.permute.xlu0 0
    %51 = vperm.xlu0 %50, %v43
    %v52 = vpop.permute.xlu0 %51
    %vm54 = vcmask 162816
    %v56 = vsel %vm54, %v40, 0
    %v59 = vsel %vm54, %v41, 0
    %vm61 = vcmask 1043456
    %v63 = vsel %vm61, %v39, 0
    %65 = vmatpush.msra.mxu0 0.0
    %66 = vmatpush.msra.mxu0 0.0
    %67 = vmatpush.msra.mxu0 0.0
    %68 = vmatpush.msra.mxu0 0.0
    %69 = vmatpush.msra.mxu0 0.0
    %70 = vmatpush.msra.mxu0 0.0
    %71 = vmatpush.msra.mxu0 0.0
    %72 = vmatpush.msra.mxu0 0.0
    %73 = vmatpush.msra.mxu0 0.0
    %74 = vmatpush.msra.mxu0 0.0
    %75 = vmatpush.msra.mxu0 0.0
    %76 = vmatpush.msra.mxu0 0.0
    %77 = vmatpush.msra.mxu0 0.0
    %78 = vmatpush.msra.mxu0 %v63
    %79 = vmatpush.msra.mxu0 %v38
    %80 = vmatpush.msra.mxu0 %v37
    %81 = vmatmul.f32.gmra.mxu0 %v56
    %v82 = vpop.f32.mrf.mxu0
    %v83 = vadd.f32 %v47, %v82
    %84 = vmatmul.f32.gmra.mxu0 %v59
    %v85 = vpop.f32.mrf.mxu0
    %v86 = vadd.f32 %v52, %v85
    %87 = vdwg.mxu0
    %v88 = vmax.f32 %v83, 0.0
    %v89 = vmax.f32 %v86, 0.0
    %v90 = vld [vmem:[%s3] sm:$0x7]
    %v91 = vld [vmem:[%s4] sm:$0x7]
    %93 = vset.pattern.permute.xlu0 0
    %94 = vperm.xlu0 %93, %v91
    %v95 = vpop.permute.xlu0 %94
    %vm97 = vcmask 80896
    %v99 = vsel %vm97, %v90, 0
    %vm101 = vcmask 1041408
    %v103 = vsel %vm101, %v89, 0
    %105 = vmatpush.msra.mxu0 0.0
    %106 = vmatpush.msra.mxu0 0.0
    %107 = vmatpush.msra.mxu0 0.0
    %108 = vmatpush.msra.mxu0 0.0
    %109 = vmatpush.msra.mxu0 0.0
    %110 = vmatpush.msra.mxu0 0.0
    %111 = vmatpush.msra.mxu0 0.0
    %112 = vmatpush.msra.mxu0 0.0
    %113 = vmatpush.msra.mxu0 0.0
    %114 = vmatpush.msra.mxu0 0.0
    %115 = vmatpush.msra.mxu0 0.0
    %116 = vmatpush.msra.mxu0 0.0
    %117 = vmatpush.msra.mxu0 0.0
    %118 = vmatpush.msra.mxu0 0.0
    %119 = vmatpush.msra.mxu0 %v103
    %120 = vmatpush.msra.mxu0 %v88
    %121 = vmatmul.f32.gmra.mxu0 %v99
    %v122 = vpop.f32.mrf.mxu0
    %v123 = vadd.f32 %v95, %v122
    %124 = vdwg.mxu0
    %125 = vst [vmem:[#allocation5] sm:$0x7] %v123
    // Predicated region
    $region26: #{tpu_custom_call.1} parent=1 // pred_check
      _
    $region27: #{tpu_custom_call.1} parent=1 // pred_check_branch
      %127 = sbr.rel (0) target = $region29
    $region28: #{tpu_custom_call.1} parent=1 // pred_region
      %129 = vsyncadd [#allocation4], 0
      %s131 = sshll.u32 [#allocation5], 4
      %s132 = int_to_ptr.vmem [resolvable:$true] %s131
      %s133 = sshll.u32 %s5, 4
      %s134 = int_to_ptr.hbm [resolvable:$true] %s133
      %136 = dma.vmem_to_hbm [thread:$0]  %s132, 64, %s134, [#allocation4]
    $region29: #{tpu_custom_call.1} parent=1 // pred_fallthru
      _
    // Predicated region
    $region30: #{tpu_custom_call.1} parent=1 // pred_check
      _
    $region31: #{tpu_custom_call.1} parent=1 // pred_check_branch
      %138 = sbr.rel (0) target = $region33
    $region32: #{tpu_custom_call.1} parent=1 // pred_region
      %140 = dma.done [#allocation4], 64
    $region33: #{tpu_custom_call.1} parent=1 // pred_fallthru
      _
    %141 = vsyncpa [#allocation3], 1
    %142 = vsyncpa [#allocation4], 1

</llo_original>
